<compile_context>
chip_gen: v7x
topology: tpu7x:2x2x1
jax: 0.10.0
libtpu: 0.0.40
codegen_flags: <defaults>
</compile_context>

<pallas_src>
import jax
import jax.numpy as jnp
from jax.experimental import pallas as pl
from jax.experimental.pallas import tpu as pltpu


def _round_up(v: int, m: int) -> int:
    return ((v + m - 1) // m) * m


def _vmem_budget():
    """Generation-aware VMEM sizing (v5e/v6e: 128 MiB, v7x: 64 MiB)."""
    default_cap = 64 * 1024 * 1024  # conservative: assume v7x-sized VMEM
    try:
        cap = int(getattr(pltpu.get_tpu_info(), "vmem_capacity_bytes", default_cap))
    except Exception:  # interpret mode / no TPU visible at trace time
        cap = default_cap
    vmem_limit = int(cap * 0.75)  # above the 16/32 MiB scoped defaults
    budget = int(cap * 0.55)      # tile-choice budget: headroom under the limit
    return budget, vmem_limit


# -----------------------------------------------------------------------------
# Single-pass path: the full reduction axis (N) is resident in every block.
# -----------------------------------------------------------------------------
def _softmax_dim0_kernel(x_ref, o_ref):
    # Each lane column is an independent softmax, so padded lanes of a partial
    # last block cannot contaminate valid columns (their stores are masked).
    # The f32 upcast is mandatory on v5e (no bf16 VPU/EUP) and harmless elsewhere.
    x = x_ref[...].astype(jnp.float32)
    x_max = jnp.max(x, axis=0, keepdims=True)           # max over dim 0
    x_exp = jnp.exp(x - x_max)                           # stable exponent (EUP)
    partition = jnp.sum(x_exp, axis=0, keepdims=True)    # sum over dim 0
    # Exact reciprocal of the (1, tile_d) row (one sublane row of work), then
    # a broadcast VPU multiply instead of N*tile_d full divides.
    inv = 1.0 / partition
    o_ref[...] = (x_exp * inv).astype(o_ref.dtype)


def _choose_tile_d(n, d, itemsize, budget):
    """Largest lane-tile width (multiple of 128, or full d) whose working set
    fits the VMEM budget. Returns None if even 128 lanes don't fit (-> caller
    uses the streaming path)."""
    d_padded = _round_up(d, 128)
    # Per 128 lanes: 2x pipelined input + 2x pipelined output blocks in the
    # native dtype, plus two live f32 temporaries (upcast x and x_exp).
    bytes_per_128 = n * 128 * (4 * itemsize + 2 * 4)
    n_tiles_128 = budget // bytes_per_128
    if n_tiles_128 < 1:
        return None
    tile_d = min(int(n_tiles_128) * 128, d_padded)
    # TODO(synk): on v7x (2 TensorCores) prefer >=2 even-sized lane tiles so the
    # 'parallel' grid axis shards across both cores; needs a TC-count query.
    if tile_d >= d:
        return d          # one full-extent block (allowed by the (8,128) rule)
    return tile_d         # multiple of 128


def _softmax_dim0_single_pass(x, tile_d, vmem_limit):
    n, d = x.shape
    itemsize = jnp.dtype(x.dtype).itemsize
    cost = pl.CostEstimate(
        flops=4 * n * d,
        transcendentals=n * d,
        bytes_accessed=2 * n * d * itemsize,
    )
    # TODO(synk): if the chosen blocks ever end up tiny (very small N), request
    # deeper input buffering via pipeline_mode=pl.Buffered(3) on the in_spec.
    return pl.pallas_call(
        _softmax_dim0_kernel,
        out_shape=jax.ShapeDtypeStruct((n, d), x.dtype),
        grid_spec=pltpu.PrefetchScalarGridSpec(
            num_scalar_prefetch=0,
            grid=(pl.cdiv(d, tile_d),),
            in_specs=[pl.BlockSpec((n, tile_d), lambda j: (0, j))],
            out_specs=pl.BlockSpec((n, tile_d), lambda j: (0, j)),
        ),
        compiler_params=pltpu.CompilerParams(
            dimension_semantics=("parallel",),
            vmem_limit_bytes=vmem_limit,
        ),
        cost_estimate=cost,
    )(x)


# -----------------------------------------------------------------------------
# Streaming (large-N) path: online max/sum over an 'arbitrary' N grid axis,
# then a normalize pass. Keeps blocks roofline-sized for any N.
# -----------------------------------------------------------------------------
def _choose_streaming_tiles(n, d, itemsize, budget):
    d_padded = _round_up(d, 128)
    tile_d = min(512, d_padded)
    if tile_d >= d:
        tile_d = d
    # Worst-case per row of a (tile_n, tile_d) block across the two passes:
    # 2x pipelined input + 2x pipelined output (native dtype) + one f32 temp.
    per_row = tile_d * (4 * itemsize + 4)
    tile_n = max(8, (int(budget // per_row) // 8) * 8)
    if tile_n >= n:
        tile_n = n
    return tile_n, tile_d


def _softmax_dim0_streaming(x, tile_n, tile_d, vmem_limit):
    n, d = x.shape
    gd = pl.cdiv(d, tile_d)
    gn = pl.cdiv(n, tile_n)

    def stats_kernel(x_ref, max_ref, sum_ref):
        i = pl.program_id(1)

        @pl.when(i == 0)
        def _():
            max_ref[...] = jnp.full_like(max_ref, -jnp.inf)
            sum_ref[...] = jnp.zeros_like(sum_ref)

        x_blk = x_ref[...].astype(jnp.float32)
        # Mask padded rows of a partial last N block (they would otherwise
        # contaminate the per-column max/sum reduction along axis 0).
        rows = jax.lax.broadcasted_iota(jnp.int32, x_blk.shape, 0) + i * tile_n
        x_blk = jnp.where(rows < n, x_blk, -jnp.inf)

        m_prev = max_ref[...]
        m_new = jnp.maximum(m_prev, jnp.max(x_blk, axis=0, keepdims=True))
        sum_ref[...] = (sum_ref[...] * jnp.exp(m_prev - m_new)
                        + jnp.sum(jnp.exp(x_blk - m_new), axis=0, keepdims=True))
        max_ref[...] = m_new

    col_max, col_sum = pl.pallas_call(
        stats_kernel,
        out_shape=(jax.ShapeDtypeStruct((1, d), jnp.float32),
                   jax.ShapeDtypeStruct((1, d), jnp.float32)),
        grid_spec=pltpu.PrefetchScalarGridSpec(
            num_scalar_prefetch=0,
            grid=(gd, gn),
            in_specs=[pl.BlockSpec((tile_n, tile_d), lambda j, i: (i, j))],
            out_specs=[pl.BlockSpec((1, tile_d), lambda j, i: (0, j)),
                       pl.BlockSpec((1, tile_d), lambda j, i: (0, j))],
        ),
        compiler_params=pltpu.CompilerParams(
            dimension_semantics=("parallel", "arbitrary"),
            vmem_limit_bytes=vmem_limit,
        ),
    )(x)

    def normalize_kernel(x_ref, max_ref, sum_ref, o_ref):
        x_blk = x_ref[...].astype(jnp.float32)
        inv = 1.0 / sum_ref[...]                         # exact, one row per tile
        o_ref[...] = (jnp.exp(x_blk - max_ref[...]) * inv).astype(o_ref.dtype)

    return pl.pallas_call(
        normalize_kernel,
        out_shape=jax.ShapeDtypeStruct((n, d), x.dtype),
        grid_spec=pltpu.PrefetchScalarGridSpec(
            num_scalar_prefetch=0,
            grid=(gd, gn),
            in_specs=[pl.BlockSpec((tile_n, tile_d), lambda j, i: (i, j)),
                      pl.BlockSpec((1, tile_d), lambda j, i: (0, j)),
                      pl.BlockSpec((1, tile_d), lambda j, i: (0, j))],
            out_specs=pl.BlockSpec((tile_n, tile_d), lambda j, i: (i, j)),
        ),
        compiler_params=pltpu.CompilerParams(
            dimension_semantics=("parallel", "parallel"),
            vmem_limit_bytes=vmem_limit,
        ),
    )(x, col_max, col_sum)


# -----------------------------------------------------------------------------
# Public wrapper
# -----------------------------------------------------------------------------
def softmax_stable(x: jax.Array, *, _force_streaming: bool = False,
                   _stream_tile_n: int | None = None,
                   _stream_tile_d: int | None = None) -> jax.Array:
    """Numerically-stable softmax over axis 0 of a 2-D array (N, D)."""
    assert x.ndim == 2, "kernel expects a 2-D input (N, D)"
    n, d = x.shape
    itemsize = jnp.dtype(x.dtype).itemsize
    budget, vmem_limit = _vmem_budget()

    if not _force_streaming:
        tile_d = _choose_tile_d(n, d, itemsize, budget)
        if tile_d is not None:
            return _softmax_dim0_single_pass(x, tile_d, vmem_limit)

    tile_n, tile_d = _choose_streaming_tiles(n, d, itemsize, budget)
    if _stream_tile_n is not None:
        tile_n = _stream_tile_n
    if _stream_tile_d is not None:
        tile_d = _stream_tile_d
    return _softmax_dim0_streaming(x, tile_n, tile_d, vmem_limit)


def _softmax_stable_ref(x: jax.Array) -> jax.Array:
    # Pure-JAX reference matching the PyTorch forward exactly.
    x_max = jnp.max(x, axis=0, keepdims=True)
    x_exp = jnp.exp(x - x_max)
    partition = jnp.sum(x_exp, axis=0, keepdims=True)
    return x_exp / partition


if __name__ == "__main__":
    key = jax.random.PRNGKey(0)
    k1, k2 = jax.random.split(key)

    # Small shape consistent with the module (softmax over dim 0). D is
    # deliberately NOT a multiple of 128 to exercise the partial-last-block path.
    x = jax.random.normal(k1, (16, 200), dtype=jnp.float32)
    out = jax.block_until_ready(softmax_stable(x))
    ref = _softmax_stable_ref(x)
    assert out.shape == x.shape and out.dtype == x.dtype
    assert jnp.allclose(out, ref, rtol=1e-5, atol=1e-6)
    # Each column should sum to ~1 along the softmax axis (dim 0).
    assert jnp.allclose(jnp.sum(out, axis=0), jnp.ones((x.shape[1],)), atol=1e-5)

    # Exercise the streaming (large-N online-softmax) path at a small shape by
    # forcing it with tiny tiles: partial blocks along both N and D.
    x2 = jax.random.normal(k2, (40, 200), dtype=jnp.float32)
    out2 = jax.block_until_ready(
        softmax_stable(x2, _force_streaming=True, _stream_tile_n=16, _stream_tile_d=128))
    ref2 = _softmax_stable_ref(x2)
    assert out2.shape == x2.shape and out2.dtype == x2.dtype
    assert jnp.allclose(out2, ref2, rtol=1e-4, atol=1e-6)

    print("KERNEL_OK")
</pallas_src>

<mosaic_0001>
module attributes {stable_mosaic.version = 11 : i64} {
  func.func @_softmax_dim0_kernel(%arg0: i32, %arg1: memref<16x200xf32, #tpu.memory_space<vmem>>, %arg2: memref<16x200xf32, #tpu.memory_space<vmem>>) attributes {dimension_semantics = [#tpu.dimension_semantics<parallel>], iteration_bounds = array<i64: 1>, scalar_prefetch = 0 : i64, scratch_operands = 0 : i64, tpu.core_type = #tpu.core_type<tc>, window_params = [{transform_indices = @transform_0, window_bounds = array<i64: 16, 200>}, {transform_indices = @transform_1, window_bounds = array<i64: 16, 200>}]} {
    %c0 = arith.constant 0 : index
    %c0_0 = arith.constant 0 : index
    %0 = vector.load %arg1[%c0, %c0_0] : memref<16x200xf32, #tpu.memory_space<vmem>>, vector<16x200xf32>
    %cst = arith.constant dense<0xFF800000> : vector<200xf32>
    %1 = vector.multi_reduction <maximumf>, %0, %cst [0] : vector<16x200xf32> to vector<200xf32>
    %2 = vector.shape_cast %1 : vector<200xf32> to vector<1x200xf32>
    %3 = vector.broadcast %2 : vector<1x200xf32> to vector<16x200xf32>
    %4 = arith.subf %0, %3 : vector<16x200xf32>
    %5 = math.exp %4 : vector<16x200xf32>
    %cst_1 = arith.constant dense<0.000000e+00> : vector<200xf32>
    %6 = vector.multi_reduction <add>, %5, %cst_1 [0] : vector<16x200xf32> to vector<200xf32>
    %7 = vector.shape_cast %6 : vector<200xf32> to vector<1x200xf32>
    %cst_2 = arith.constant 1.000000e+00 : f32
    %8 = vector.broadcast %cst_2 : f32 to vector<1x200xf32>
    %9 = arith.divf %8, %7 : vector<1x200xf32>
    %10 = vector.broadcast %9 : vector<1x200xf32> to vector<16x200xf32>
    %11 = arith.mulf %5, %10 : vector<16x200xf32>
    %c0_3 = arith.constant 0 : index
    %c0_4 = arith.constant 0 : index
    %12 = vector.load %arg2[%c0_3, %c0_4] : memref<16x200xf32, #tpu.memory_space<vmem>>, vector<16x200xf32>
    tpu.vector_store %arg2[%c0_3, %c0_4], %11 {strides = array<i32>} : memref<16x200xf32, #tpu.memory_space<vmem>>, vector<16x200xf32>,
    return
  }
  func.func @transform_0(%arg0: i32) -> (i32, i32) {
    %c0_i32 = arith.constant 0 : i32
    %c0_i32_0 = arith.constant 0 : i32
    return %c0_i32, %arg0 : i32, i32
  }
  func.func @transform_1(%arg0: i32) -> (i32, i32) {
    %c0_i32 = arith.constant 0 : i32
    %c0_i32_0 = arith.constant 0 : i32
    return %c0_i32, %arg0 : i32, i32
  }
}

</mosaic_0001>

<llo_original>
// kernel: tpu_custom_call.1
$region0: #{tpu_custom_call.1}
  #allocation0 [shape = 'u32[]', space=smem, size = 0x4, offset = 0x4, fixed_abs, tag = 'smem constant byte address 0x4 - core index']
  #allocation1 [shape = 'u32[144,128]{1,0:T(1,128)}', space=vmem, size = 0x12000, scoped, tag = 'internal scratch']
  %s0 = inlined_call_operand.hbm [shape: f32[16,200], index: 0, kind: input, shape index: {}]
  %s1 = inlined_call_operand.hbm [shape: f32[16,200], index: 1, kind: output, shape index: {}]
  %s2 = sld [smem:[#allocation0]]
  $region18: #{tpu_custom_call.1} parent=0
    _
  %s4 = ssub.s32 1, %s2
  %s5 = scalar_select 0, %s4, %s2
  $region1: #{tpu_custom_call.1} parent=0
    #allocation2 [shape = 'u8[16384]{0}', space=vmem, size = 0x4000, scoped, tag = 'input window, operand 0, single buffered']
    #allocation3 [shape = 's32[1]{0}', space=sflag, size = 0x4, scoped, tag = 'scoped memory for tpu_custom_call.1']
    #allocation4 [shape = 's32[1]{0}', space=sflag, size = 0x4, scoped, tag = 'scoped memory for tpu_custom_call.1']
    #allocation5 [shape = 'u8[16384]{0}', space=vmem, size = 0x4000, scoped, tag = 'output window, operand 0, single buffered']
    %6 = vsyncpa [#allocation3], 0
    %7 = vsyncpa [#allocation4], 0
    // Predicated region
    $region2: #{tpu_custom_call.1} parent=1 // pred_check
      _
    $region3: #{tpu_custom_call.1} parent=1 // pred_check_branch
      %9 = sbr.rel (0) target = $region5
    $region4: #{tpu_custom_call.1} parent=1 // pred_region
      %s11 = ssub.s32 512, 512
      %12 = vsyncadd [#allocation3], %s11
      %s13 = sshll.u32 [#allocation2], 4
      %s14 = int_to_ptr.vmem [resolvable:$true] %s13
      %19 = dma.hbm_to_vmem [thread:$0]  %s0, 512, %s14, [#allocation3], 256, 256, 16
    $region5: #{tpu_custom_call.1} parent=1 // pred_fallthru
      _
    // Predicated region
    $region6: #{tpu_custom_call.1} parent=1 // pred_check
      _
    $region7: #{tpu_custom_call.1} parent=1 // pred_check_branch
      %21 = sbr.rel (0) target = $region9
    $region8: #{tpu_custom_call.1} parent=1 // pred_region
      %22 = dma.done [#allocation3], 512
    $region9: #{tpu_custom_call.1} parent=1 // pred_fallthru
      _
    %v23 = vld [vmem:[#allocation2] sm:$0xff]
    %v24 = vld [vmem:[#allocation2 + $0x8] sm:$0xff]
    %v25 = vld [vmem:[#allocation2 + $0x10] sm:$0xff]
    %v26 = vld [vmem:[#allocation2 + $0x18] sm:$0xff]
    %v27 = vmax.f32 %v23, %v25
    %v28 = vrot.slane %v27, 4
    %v29 = vmax.f32 %v27, %v28
    %v30 = vrot.slane %v29, 2
    %v31 = vmax.f32 %v29, %v30
    %v32 = vrot.slane %v31, 1
    %v33 = vmax.f32 %v31, %v32
    %vm34 = vcmask 588800
    %v35 = vsel %vm34, %v24, -inf
    %v36 = vsel %vm34, %v26, -inf
    %v37 = vmax.f32 %v35, %v36
    %v38 = vrot.slane %v37, 4
    %v39 = vmax.f32 %v37, %v38
    %v40 = vrot.slane %v39, 2
    %v41 = vmax.f32 %v39, %v40
    %v42 = vrot.slane %v41, 1
    %v43 = vmax.f32 %v41, %v42
    %v44 = vsub.f32 %v23, %v33
    %v45 = vsub.f32 %v24, %v43
    %v46 = vsub.f32 %v25, %v33
    %v47 = vsub.f32 %v26, %v43
    %v48 = vmul.f32 %v44, 1.442695
    %v49 = vpow.pop %v48
    %v50 = vmul.f32 %v45, 1.442695
    %v51 = vpow.pop %v50
    %v52 = vmul.f32 %v46, 1.442695
    %v53 = vpow.pop %v52
    %v54 = vmul.f32 %v47, 1.442695
    %v55 = vpow.pop %v54
    %v56 = vadd.f32 %v49, %v53
    %v57 = vrot.slane %v56, 4
    %v58 = vadd.f32 %v56, %v57
    %v59 = vrot.slane %v58, 2
    %v60 = vadd.f32 %v58, %v59
    %v61 = vrot.slane %v60, 1
    %v62 = vadd.f32 %v60, %v61
    %v63 = vsel %vm34, %v51, 0.0
    %v64 = vsel %vm34, %v55, 0.0
    %v65 = vadd.f32 %v63, %v64
    %v66 = vrot.slane %v65, 4
    %v67 = vadd.f32 %v65, %v66
    %v68 = vrot.slane %v67, 2
    %v69 = vadd.f32 %v67, %v68
    %v70 = vrot.slane %v69, 1
    %v71 = vadd.f32 %v69, %v70
    %v72 = vrcp.pop %v62
    %v73 = vmul.f32 1.0, %v72
    %v74 = vrcp.pop %v71
    %v75 = vmul.f32 1.0, %v74
    %v76 = vmul.f32 %v49, %v73
    %v77 = vmul.f32 %v51, %v75
    %v78 = vmul.f32 %v53, %v73
    %v79 = vmul.f32 %v55, %v75
    %80 = vst [vmem:[#allocation5] sm:$0xff] %v76
    %81 = vst.msk [vmem:[#allocation5 + $0x8] sm:$0xff] %vm34, %v77
    %82 = vst [vmem:[#allocation5 + $0x10] sm:$0xff] %v78
    %83 = vst.msk [vmem:[#allocation5 + $0x18] sm:$0xff] %vm34, %v79
    // Predicated region
    $region10: #{tpu_custom_call.1} parent=1 // pred_check
      _
    $region11: #{tpu_custom_call.1} parent=1 // pred_check_branch
      %85 = sbr.rel (0) target = $region13
    $region12: #{tpu_custom_call.1} parent=1 // pred_region
      %s87 = ssub.s32 512, 512
      %88 = vsyncadd [#allocation4], %s87
      %s89 = sshll.u32 [#allocation5], 4
      %s90 = int_to_ptr.vmem [resolvable:$true] %s89
      %95 = dma.vmem_to_hbm [thread:$0]  %s90, 512, %s1, [#allocation4], 256, 256, 16
    $region13: #{tpu_custom_call.1} parent=1 // pred_fallthru
      _
    // Predicated region
    $region14: #{tpu_custom_call.1} parent=1 // pred_check
      _
    $region15: #{tpu_custom_call.1} parent=1 // pred_check_branch
      %97 = sbr.rel (0) target = $region17
    $region16: #{tpu_custom_call.1} parent=1 // pred_region
      %98 = dma.done [#allocation4], 512
    $region17: #{tpu_custom_call.1} parent=1 // pred_fallthru
      _
    %99 = vsyncpa [#allocation3], 1
    %100 = vsyncpa [#allocation4], 1

</llo_original>
